<compile_context>
chip_gen: v5e
topology: v5e:2x2
jax: 0.10.0
libtpu: 0.0.40
codegen_flags: <defaults>
</compile_context>

<pallas_src>
import jax
import jax.numpy as jnp
from jax.experimental import pallas as pl
from jax.experimental.pallas import tpu as pltpu

MAX_TP = 2048  # max pair-axis tile size (lane dimension), multiple of 128


# ----------------------------- kernels ------------------------------------ #

def _distance_kernel(v0_ref, v1_ref, d_ref):
    # v0_ref / v1_ref: (B, 3, TP) VMEM tiles; d_ref: (B, TP)
    v0 = v0_ref[...]
    v1 = v1_ref[...]
    dx = v0[:, 0, :] - v1[:, 0, :]
    dy = v0[:, 1, :] - v1[:, 1, :]
    dz = v0[:, 2, :] - v1[:, 2, :]
    d_ref[...] = jnp.sqrt(dx * dx + dy * dy + dz * dz)


def _loss_kernel(v0_ref, v1_ref, d0_ref, part_ref):
    # v0_ref / v1_ref: (B, 3, TP); d0_ref: (B, TP); part_ref: (1, TP) per-tile
    # lane-dense partial sums (summed over batch); final sum happens in JAX.
    v0 = v0_ref[...]
    v1 = v1_ref[...]
    dx = v0[:, 0, :] - v1[:, 0, :]
    dy = v0[:, 1, :] - v1[:, 1, :]
    dz = v0[:, 2, :] - v1[:, 2, :]
    d = jnp.sqrt(dx * dx + dy * dy + dz * dz)          # (B, TP)
    r = d - d0_ref[...]                                # (B, TP)
    part_ref[...] = jnp.sum(r * r, axis=0, keepdims=True)   # (1, TP)


# ----------------------------- glue / wrappers ----------------------------- #

def _round_up(x, m):
    return ((x + m - 1) // m) * m


def _tile_and_pad(P):
    """Pick the pair-axis tile (multiple of 128, up to MAX_TP) and padded extent."""
    tp = min(MAX_TP, _round_up(P, 128))
    pp = _round_up(P, tp)
    return tp, pp


def _pad_neighbors(neighbors, pp):
    """Pad the (P, 2) index array with (0, 0) pairs (zero-distance, zero-loss)."""
    pad = pp - neighbors.shape[0]
    if pad:
        neighbors = jnp.concatenate(
            [neighbors, jnp.zeros((pad, 2), neighbors.dtype)], axis=0)
    return neighbors


def _gather_pairs_lane_dense(verts, neighbors_padded):
    """verts: (B, N, 3) -> two (B, 3, Pp) arrays, pair axis on lanes."""
    verts_t = jnp.transpose(verts.astype(jnp.float32), (0, 2, 1))   # (B, 3, N)
    v0 = jnp.take(verts_t, neighbors_padded[:, 0], axis=2)          # (B, 3, Pp)
    v1 = jnp.take(verts_t, neighbors_padded[:, 1], axis=2)          # (B, 3, Pp)
    return v0, v1


def neighbor_distances(verts, neighbors):
    """Pallas kernel computing per-pair L2 distances: returns (B, P) float32."""
    B = verts.shape[0]
    P = neighbors.shape[0]
    tp, pp = _tile_and_pad(P)
    nb = _pad_neighbors(neighbors, pp)
    v0, v1 = _gather_pairs_lane_dense(verts, nb)

    d = pl.pallas_call(
        _distance_kernel,
        out_shape=jax.ShapeDtypeStruct((B, pp), jnp.float32),
        grid=(pp // tp,),
        in_specs=[
            pl.BlockSpec((B, 3, tp), lambda i: (0, 0, i)),
            pl.BlockSpec((B, 3, tp), lambda i: (0, 0, i)),
        ],
        out_specs=pl.BlockSpec((B, tp), lambda i: (0, i)),
        compiler_params=pltpu.CompilerParams(
            dimension_semantics=("parallel",)),
    )(v0, v1)
    return d[:, :P]


def neighbor_distance_loss(verts, d0, neighbors):
    """Pallas kernel computing sum((||v0 - v1|| - d0)^2) -> scalar float32."""
    B = verts.shape[0]
    P = neighbors.shape[0]
    tp, pp = _tile_and_pad(P)
    nb = _pad_neighbors(neighbors, pp)
    v0, v1 = _gather_pairs_lane_dense(verts, nb)
    # Padded slots: both endpoints are vertex 0 -> distance 0, d0 padded 0 -> r=0.
    d0p = jnp.pad(d0.astype(jnp.float32), ((0, 0), (0, pp - P)))

    partials = pl.pallas_call(
        _loss_kernel,
        out_shape=jax.ShapeDtypeStruct((1, pp), jnp.float32),
        grid=(pp // tp,),
        in_specs=[
            pl.BlockSpec((B, 3, tp), lambda i: (0, 0, i)),
            pl.BlockSpec((B, 3, tp), lambda i: (0, 0, i)),
            pl.BlockSpec((B, tp), lambda i: (0, i)),
        ],
        out_specs=pl.BlockSpec((1, tp), lambda i: (0, i)),
        compiler_params=pltpu.CompilerParams(
            dimension_semantics=("parallel",)),   # no resident accumulator ->
                                                  # megacore-shardable on v7x
    )(v0, v1, d0p)
    return jnp.sum(partials)


class NeighborDistanceLoss:
    """Stateful wrapper mirroring the PyTorch module (first call sets d0)."""
    # TODO(synk): the first-call d0 caching is Python-side state and is not
    #             jit/vmap-safe, mirroring the PyTorch module's behavior.

    def __init__(self, all_neighbors):
        # all_neighbors: (P, 2) int32 — synthetic, deterministic (no .npy load)
        self.all_neighbors = all_neighbors
        self.init_distance = False
        self.neighbor_distance_0 = None

    def __call__(self, template_vertices):
        if not self.init_distance:
            self.init_distance = True
            sc2 = jax.lax.stop_gradient(template_vertices)  # detach().clone()
            self.neighbor_distance_0 = neighbor_distances(sc2, self.all_neighbors)
        return neighbor_distance_loss(
            template_vertices, self.neighbor_distance_0, self.all_neighbors)


# ----------------------------- demo / check -------------------------------- #

if __name__ == "__main__":
    key = jax.random.PRNGKey(0)
    k1, k2, k3 = jax.random.split(key, 3)

    B, N, P = 2, 16, 64
    neighbors = jax.random.randint(k1, (P, 2), 0, N, dtype=jnp.int32)
    verts0 = jax.random.normal(k2, (B, N, 3), dtype=jnp.float32)

    loss_mod = NeighborDistanceLoss(neighbors)

    # First call initializes the reference distances (loss should be ~0).
    l0 = loss_mod(verts0)

    # Second call with perturbed vertices.
    verts1 = verts0 + 0.1 * jax.random.normal(k3, (B, N, 3), dtype=jnp.float32)
    l1 = loss_mod(verts1)
    jax.block_until_ready((l0, l1))

    # Pure-JAX reference check.
    def ref_dist(v):
        d = v[:, neighbors[:, 0], :] - v[:, neighbors[:, 1], :]
        return jnp.sqrt(jnp.sum(d * d, axis=-1))

    ref0 = jnp.sum((ref_dist(verts0) - ref_dist(verts0)) ** 2)
    ref1 = jnp.sum((ref_dist(verts1) - ref_dist(verts0)) ** 2)
    assert jnp.allclose(l0, ref0, atol=1e-4, rtol=1e-4), (l0, ref0)
    assert jnp.allclose(l1, ref1, atol=1e-4, rtol=1e-4), (l1, ref1)

    print("KERNEL_OK")
</pallas_src>

<mosaic_0001>
module attributes {stable_mosaic.version = 11 : i64} {
  func.func @_distance_kernel(%arg0: i32, %arg1: memref<2x3x128xf32, #tpu.memory_space<vmem>>, %arg2: memref<2x3x128xf32, #tpu.memory_space<vmem>>, %arg3: memref<2x128xf32, #tpu.memory_space<vmem>>) attributes {dimension_semantics = [#tpu.dimension_semantics<parallel>], iteration_bounds = array<i64: 1>, scalar_prefetch = 0 : i64, scratch_operands = 0 : i64, tpu.core_type = #tpu.core_type<tc>, window_params = [{transform_indices = @transform_0, window_bounds = array<i64: 2, 3, 128>}, {transform_indices = @transform_1, window_bounds = array<i64: 2, 3, 128>}, {transform_indices = @transform_2, window_bounds = array<i64: 2, 128>}]} {
    %c0 = arith.constant 0 : index
    %c0_0 = arith.constant 0 : index
    %c0_1 = arith.constant 0 : index
    %0 = vector.load %arg1[%c0, %c0_0, %c0_1] : memref<2x3x128xf32, #tpu.memory_space<vmem>>, vector<2x3x128xf32>
    %c0_2 = arith.constant 0 : index
    %c0_3 = arith.constant 0 : index
    %c0_4 = arith.constant 0 : index
    %1 = vector.load %arg2[%c0_2, %c0_3, %c0_4] : memref<2x3x128xf32, #tpu.memory_space<vmem>>, vector<2x3x128xf32>
    %2 = vector.extract_strided_slice %0 {offsets = [0, 0, 0], sizes = [2, 1, 128], strides = [1, 1, 1]} : vector<2x3x128xf32> to vector<2x1x128xf32>
    %3 = vector.shape_cast %2 : vector<2x1x128xf32> to vector<2x128xf32>
    %4 = vector.extract_strided_slice %1 {offsets = [0, 0, 0], sizes = [2, 1, 128], strides = [1, 1, 1]} : vector<2x3x128xf32> to vector<2x1x128xf32>
    %5 = vector.shape_cast %4 : vector<2x1x128xf32> to vector<2x128xf32>
    %6 = arith.subf %3, %5 : vector<2x128xf32>
    %7 = vector.extract_strided_slice %0 {offsets = [0, 1, 0], sizes = [2, 1, 128], strides = [1, 1, 1]} : vector<2x3x128xf32> to vector<2x1x128xf32>
    %8 = vector.shape_cast %7 : vector<2x1x128xf32> to vector<2x128xf32>
    %9 = vector.extract_strided_slice %1 {offsets = [0, 1, 0], sizes = [2, 1, 128], strides = [1, 1, 1]} : vector<2x3x128xf32> to vector<2x1x128xf32>
    %10 = vector.shape_cast %9 : vector<2x1x128xf32> to vector<2x128xf32>
    %11 = arith.subf %8, %10 : vector<2x128xf32>
    %12 = vector.extract_strided_slice %0 {offsets = [0, 2, 0], sizes = [2, 1, 128], strides = [1, 1, 1]} : vector<2x3x128xf32> to vector<2x1x128xf32>
    %13 = vector.shape_cast %12 : vector<2x1x128xf32> to vector<2x128xf32>
    %14 = vector.extract_strided_slice %1 {offsets = [0, 2, 0], sizes = [2, 1, 128], strides = [1, 1, 1]} : vector<2x3x128xf32> to vector<2x1x128xf32>
    %15 = vector.shape_cast %14 : vector<2x1x128xf32> to vector<2x128xf32>
    %16 = arith.subf %13, %15 : vector<2x128xf32>
    %17 = arith.mulf %6, %6 : vector<2x128xf32>
    %18 = arith.mulf %11, %11 : vector<2x128xf32>
    %19 = arith.addf %17, %18 : vector<2x128xf32>
    %20 = arith.mulf %16, %16 : vector<2x128xf32>
    %21 = arith.addf %19, %20 : vector<2x128xf32>
    %22 = math.sqrt %21 : vector<2x128xf32>
    %c0_5 = arith.constant 0 : index
    %c0_6 = arith.constant 0 : index
    %23 = vector.load %arg3[%c0_5, %c0_6] : memref<2x128xf32, #tpu.memory_space<vmem>>, vector<2x128xf32>
    tpu.vector_store %arg3[%c0_5, %c0_6], %22 {strides = array<i32>} : memref<2x128xf32, #tpu.memory_space<vmem>>, vector<2x128xf32>,
    return
  }
  func.func @transform_0(%arg0: i32) -> (i32, i32, i32) {
    %c0_i32 = arith.constant 0 : i32
    %c0_i32_0 = arith.constant 0 : i32
    %c0_i32_1 = arith.constant 0 : i32
    return %c0_i32, %c0_i32_0, %arg0 : i32, i32, i32
  }
  func.func @transform_1(%arg0: i32) -> (i32, i32, i32) {
    %c0_i32 = arith.constant 0 : i32
    %c0_i32_0 = arith.constant 0 : i32
    %c0_i32_1 = arith.constant 0 : i32
    return %c0_i32, %c0_i32_0, %arg0 : i32, i32, i32
  }
  func.func @transform_2(%arg0: i32) -> (i32, i32) {
    %c0_i32 = arith.constant 0 : i32
    %c0_i32_0 = arith.constant 0 : i32
    return %c0_i32, %arg0 : i32, i32
  }
}

</mosaic_0001>

<llo_original>
// kernel: tpu_custom_call.1
$region0: #{tpu_custom_call.1}
  #allocation0 [shape = 'u32[]', space=smem, size = 0x4, offset = 0x4, fixed_abs, tag = 'smem constant byte address 0x4 - core index']
  #allocation1 [shape = 'u32[72,128]{1,0:T(1,128)}', space=vmem, size = 0x9000, scoped, tag = 'internal scratch']
  %s0 = inlined_call_operand.vmem [shape: f32[2,3,128], index: 0, kind: input, shape index: {}]
  %s1 = inlined_call_operand.vmem [shape: f32[2,3,128], index: 1, kind: input, shape index: {}]
  %s2 = inlined_call_operand.hbm [shape: f32[2,128], index: 2, kind: output, shape index: {}]
  %s3 = sld [smem:[#allocation0]]
  $region18: #{tpu_custom_call.1} parent=0
    _
  %s5 = ssub.s32 1, %s3
  %s6 = scalar_select 0, %s5, %s3
  $region1: #{tpu_custom_call.1} parent=0
    #allocation2 [shape = 'u8[1024]{0}', space=vmem, size = 0x400, scoped, tag = 'output window, operand 0, single buffered']
    #allocation3 [shape = 's32[1]{0}', space=sflag, size = 0x4, scoped, tag = 'scoped memory for tpu_custom_call.1']
    %7 = vsyncpa [#allocation3], 0
    // Predicated region
    $region2: #{tpu_custom_call.1} parent=1 // pred_check
      _
    $region3: #{tpu_custom_call.1} parent=1 // pred_check_branch
      %9 = sbr.rel (0) target = $region5
    $region4: #{tpu_custom_call.1} parent=1 // pred_region
      _
    $region5: #{tpu_custom_call.1} parent=1 // pred_fallthru
      _
    // Predicated region
    $region6: #{tpu_custom_call.1} parent=1 // pred_check
      _
    $region7: #{tpu_custom_call.1} parent=1 // pred_check_branch
      %11 = sbr.rel (0) target = $region9
    $region8: #{tpu_custom_call.1} parent=1 // pred_region
      _
    $region9: #{tpu_custom_call.1} parent=1 // pred_fallthru
      _
    %v12 = vld [vmem:[%s0] sm:$0x7]
    %v13 = vld [vmem:[%s0 + $0x4] sm:$0x7]
    %v14 = vld [vmem:[%s1] sm:$0x7]
    %v15 = vld [vmem:[%s1 + $0x4] sm:$0x7]
    %v16 = vsub.f32 %v12, %v14
    %v17 = vsub.f32 %v13, %v15
    %v18 = vmul.f32 %v16, %v16
    %v19 = vmul.f32 %v17, %v17
    %v22 = vrot.slane %v18, 1
    %v23 = vrot.slane %v19, 1
    %v26 = vadd.f32 %v18, %v22
    %v27 = vadd.f32 %v19, %v23
    %v28 = vrot.slane %v18, 2
    %v29 = vrot.slane %v19, 2
    %v32 = vadd.f32 %v26, %v28
    %v33 = vadd.f32 %v27, %v29
    %v34 = vrsqrt.pop %v32
    %v35 = vmul.f32 %v34, %v32
    %v36 = vmul.f32 %v35, %v34
    %v37 = vmul.f32 0.5, %v36
    %v38 = vsub.f32 1.5, %v37
    %v39 = vmul.f32 %v34, %v38
    %v40 = vmul.f32 %v32, %v39
    %vm41 = vcmp.eq.f32.partialorder %v32, inf
    %v42 = vsel %vm41, %v32, %v40
    %vm43 = vcmp.eq.f32.partialorder %v32, 0.0
    %v44 = vand.u32 %v32, 2147483648
    %v45 = vsel %vm43, %v44, %v42
    %v46 = vrsqrt.pop %v33
    %v47 = vmul.f32 %v46, %v33
    %v48 = vmul.f32 %v47, %v46
    %v49 = vmul.f32 0.5, %v48
    %v50 = vsub.f32 1.5, %v49
    %v51 = vmul.f32 %v46, %v50
    %v52 = vmul.f32 %v33, %v51
    %vm53 = vcmp.eq.f32.partialorder %v33, inf
    %v54 = vsel %vm53, %v33, %v52
    %vm55 = vcmp.eq.f32.partialorder %v33, 0.0
    %v56 = vand.u32 %v33, 2147483648
    %v57 = vsel %vm55, %v56, %v54
    %v60 = vrot.slane %v57, 7
    %vm61 = vcmask 1041409
    %v62 = vsel %vm61, %v60, %v45
    %64 = vst [vmem:[#allocation2] sm:$0x3] %v62
    // Predicated region
    $region10: #{tpu_custom_call.1} parent=1 // pred_check
      _
    $region11: #{tpu_custom_call.1} parent=1 // pred_check_branch
      %66 = sbr.rel (0) target = $region13
    $region12: #{tpu_custom_call.1} parent=1 // pred_region
      %68 = vsyncadd [#allocation3], 0
      %s70 = sshll.u32 [#allocation2], 4
      %s71 = int_to_ptr.vmem [resolvable:$true] %s70
      %s72 = sshll.u32 %s2, 4
      %s73 = int_to_ptr.hbm [resolvable:$true] %s72
      %75 = dma.vmem_to_hbm [thread:$0]  %s71, 32, %s73, [#allocation3]
    $region13: #{tpu_custom_call.1} parent=1 // pred_fallthru
      _
    // Predicated region
    $region14: #{tpu_custom_call.1} parent=1 // pred_check
      _
    $region15: #{tpu_custom_call.1} parent=1 // pred_check_branch
      %77 = sbr.rel (0) target = $region17
    $region16: #{tpu_custom_call.1} parent=1 // pred_region
      %79 = dma.done [#allocation3], 32
    $region17: #{tpu_custom_call.1} parent=1 // pred_fallthru
      _
    %80 = vsyncpa [#allocation3], 1

</llo_original>
